<compile_context>
chip_gen: v7x
topology: tpu7x:2x2x1
jax: 0.10.0
libtpu: 0.0.40
codegen_flags: <defaults>
</compile_context>

<pallas_src>
import functools

import jax
import jax.numpy as jnp
from jax.experimental import pallas as pl
from jax.experimental.pallas import tpu as pltpu

hidden_sizes = [256, 128, 32]
input_size = 531
output_size1 = 3
output_size2 = 4

K_PAD = 640      # input_size (531) zero-padded up to a multiple of 128
HEAD_PAD = 8     # fused head width (3 + 4 = 7) padded to 8


def netmlp_kernel(x_ref,
                  w1_ref, b1_ref,
                  w2_ref, b2_ref,
                  w3_ref, b3_ref,
                  wh_ref, bh_ref,
                  out_ref):
    # Matmul operands are bf16 (MXU-native); accumulate in f32
    # (preferred_element_type); bias add + ReLU stay in f32 on the VPU.
    h = jnp.dot(x_ref[...], w1_ref[...], preferred_element_type=jnp.float32) + b1_ref[...]
    h = jnp.maximum(h, 0.0).astype(jnp.bfloat16)

    h = jnp.dot(h, w2_ref[...], preferred_element_type=jnp.float32) + b2_ref[...]
    h = jnp.maximum(h, 0.0).astype(jnp.bfloat16)

    h = jnp.dot(h, w3_ref[...], preferred_element_type=jnp.float32) + b3_ref[...]
    h = jnp.maximum(h, 0.0).astype(jnp.bfloat16)

    # Fused heads: single (TILE_B, 32) @ (32, 8) matmul.
    s = jnp.dot(h, wh_ref[...], preferred_element_type=jnp.float32) + bh_ref[...]
    out_ref[...] = s.astype(out_ref.dtype)


def _round_up(n, m):
    return ((n + m - 1) // m) * m


@functools.partial(jax.jit, static_argnames=("tile_b",))
def netmlp_forward(x, params, tile_b=1024):
    """x: (B, input_size) f32.  params: (W, b) pairs for fl1, fl2, fl3, share1, share2."""
    w1, b1, w2, b2, w3, b3, ws1, bs1, ws2, bs2 = params
    B = x.shape[0]
    n_out = output_size1 + output_size2

    # ---- wrapper-side layout prep (pure XLA, outside the kernel, done once) ----
    # Fuse the two heads and pad the fused width to HEAD_PAD.
    wh = jnp.pad(jnp.concatenate([ws1, ws2], axis=1), ((0, 0), (0, HEAD_PAD - n_out)))
    bh = jnp.pad(jnp.concatenate([bs1, bs2], axis=1), ((0, 0), (0, HEAD_PAD - n_out)))

    # Zero-pad the first-layer contraction dim 531 -> 640 (keeps results exact).
    x_p = jnp.pad(x, ((0, 0), (0, K_PAD - input_size)))
    w1_p = jnp.pad(w1, ((0, K_PAD - input_size), (0, 0)))

    # bf16 matmul operands; f32 biases.
    x_p = x_p.astype(jnp.bfloat16)
    w1_b = w1_p.astype(jnp.bfloat16)
    w2_b = w2.astype(jnp.bfloat16)
    w3_b = w3.astype(jnp.bfloat16)
    wh_b = wh.astype(jnp.bfloat16)
    b1_f = b1.astype(jnp.float32)
    b2_f = b2.astype(jnp.float32)
    b3_f = b3.astype(jnp.float32)
    bh_f = bh.astype(jnp.float32)

    # ---- batch tiling ----
    tb = min(tile_b, _round_up(B, 8))      # sublane-aligned tile, capped at tile_b
    B_pad = _round_up(B, tb)
    if B_pad != B:
        x_p = jnp.pad(x_p, ((0, B_pad - B), (0, 0)))
    grid = (B_pad // tb,)

    x_spec = pl.BlockSpec((tb, K_PAD), lambda i: (i, 0))

    def const_spec(arr):
        # Constant block index -> DMA'd once, stays VMEM-resident across the grid.
        return pl.BlockSpec(arr.shape, lambda i: (0, 0))

    out = pl.pallas_call(
        netmlp_kernel,
        out_shape=jax.ShapeDtypeStruct((B_pad, HEAD_PAD), jnp.float32),
        grid=grid,
        in_specs=[
            x_spec,
            const_spec(w1_b), const_spec(b1_f),
            const_spec(w2_b), const_spec(b2_f),
            const_spec(w3_b), const_spec(b3_f),
            const_spec(wh_b), const_spec(bh_f),
        ],
        out_specs=pl.BlockSpec((tb, HEAD_PAD), lambda i: (i, 0)),
        compiler_params=pltpu.CompilerParams(
            dimension_semantics=("parallel",),   # shard batch tiles across v7x TCs
        ),
        # If profiles ever show exposed x-stream DMA at large TILE_B, add
        # pipeline_mode=pl.Buffered(3) on x_spec (check VMEM budget on v7x).
    )(x_p, w1_b, b1_f, w2_b, b2_f, w3_b, b3_f, wh_b, bh_f)

    out1 = out[:B, :output_size1]
    out2 = out[:B, output_size1:output_size1 + output_size2]
    return out1, out2


def init_params(key):
    """Deterministic init matching nn.Linear shapes (stored as (in, out))."""
    dims = [
        (input_size, hidden_sizes[0]),        # fl1
        (hidden_sizes[0], hidden_sizes[1]),   # fl2
        (hidden_sizes[1], hidden_sizes[2]),   # fl3
        (hidden_sizes[2], output_size1),      # share1
        (hidden_sizes[2], output_size2),      # share2
    ]
    params = []
    for (fan_in, fan_out) in dims:
        key, kw, kb = jax.random.split(key, 3)
        bound = 1.0 / jnp.sqrt(fan_in)
        W = jax.random.uniform(kw, (fan_in, fan_out), jnp.float32, -bound, bound)
        b = jax.random.uniform(kb, (1, fan_out), jnp.float32, -bound, bound)
        params.extend([W, b])
    return tuple(params)


def netmlp_reference(x, params):
    (w1, b1, w2, b2, w3, b3, ws1, bs1, ws2, bs2) = params
    h = jnp.maximum(x @ w1 + b1, 0.0)
    h = jnp.maximum(h @ w2 + b2, 0.0)
    h = jnp.maximum(h @ w3 + b3, 0.0)
    return h @ ws1 + bs1, h @ ws2 + bs2


if __name__ == "__main__":
    key = jax.random.PRNGKey(0)
    key, kx = jax.random.split(key)
    B = 8
    x = jax.random.normal(kx, (B, input_size), jnp.float32)
    params = init_params(key)

    out1, out2 = netmlp_forward(x, params)
    jax.block_until_ready((out1, out2))

    ref1, ref2 = netmlp_reference(x, params)
    assert out1.shape == (B, output_size1) and out2.shape == (B, output_size2)
    # bf16 matmul operands with f32 accumulation -> loose tolerance vs f32 reference.
    assert jnp.allclose(out1, ref1, atol=5e-2, rtol=5e-2)
    assert jnp.allclose(out2, ref2, atol=5e-2, rtol=5e-2)

    print("KERNEL_OK")
</pallas_src>

<mosaic_0001>
module attributes {stable_mosaic.version = 11 : i64} {
  func.func @netmlp_kernel(%arg0: i32, %arg1: memref<8x640xbf16, #tpu.memory_space<vmem>>, %arg2: memref<640x256xbf16, #tpu.memory_space<vmem>>, %arg3: memref<1x256xf32, #tpu.memory_space<vmem>>, %arg4: memref<256x128xbf16, #tpu.memory_space<vmem>>, %arg5: memref<1x128xf32, #tpu.memory_space<vmem>>, %arg6: memref<128x32xbf16, #tpu.memory_space<vmem>>, %arg7: memref<1x32xf32, #tpu.memory_space<vmem>>, %arg8: memref<32x8xbf16, #tpu.memory_space<vmem>>, %arg9: memref<1x8xf32, #tpu.memory_space<vmem>>, %arg10: memref<8x8xf32, #tpu.memory_space<vmem>>) attributes {dimension_semantics = [#tpu.dimension_semantics<parallel>], iteration_bounds = array<i64: 1>, scalar_prefetch = 0 : i64, scratch_operands = 0 : i64, tpu.core_type = #tpu.core_type<tc>, window_params = [{transform_indices = @transform_0, window_bounds = array<i64: 8, 640>}, {pipeline_mode = #tpu.pipeline_mode<synchronous>, transform_indices = @transform_1, window_bounds = array<i64: 640, 256>}, {pipeline_mode = #tpu.pipeline_mode<synchronous>, transform_indices = @transform_2, window_bounds = array<i64: 1, 256>}, {pipeline_mode = #tpu.pipeline_mode<synchronous>, transform_indices = @transform_3, window_bounds = array<i64: 256, 128>}, {pipeline_mode = #tpu.pipeline_mode<synchronous>, transform_indices = @transform_4, window_bounds = array<i64: 1, 128>}, {pipeline_mode = #tpu.pipeline_mode<synchronous>, transform_indices = @transform_5, window_bounds = array<i64: 128, 32>}, {pipeline_mode = #tpu.pipeline_mode<synchronous>, transform_indices = @transform_6, window_bounds = array<i64: 1, 32>}, {pipeline_mode = #tpu.pipeline_mode<synchronous>, transform_indices = @transform_7, window_bounds = array<i64: 32, 8>}, {pipeline_mode = #tpu.pipeline_mode<synchronous>, transform_indices = @transform_8, window_bounds = array<i64: 1, 8>}, {transform_indices = @transform_9, window_bounds = array<i64: 8, 8>}]} {
    %c0 = arith.constant 0 : index
    %c0_0 = arith.constant 0 : index
    %0 = vector.load %arg1[%c0, %c0_0] : memref<8x640xbf16, #tpu.memory_space<vmem>>, vector<8x640xbf16>
    %c0_1 = arith.constant 0 : index
    %c0_2 = arith.constant 0 : index
    %1 = vector.load %arg2[%c0_1, %c0_2] : memref<640x256xbf16, #tpu.memory_space<vmem>>, vector<640x256xbf16>
    %cst = arith.constant dense<0.000000e+00> : vector<8x256xf32>
    %2 = tpu.matmul %0, %1, %cst {dimension_numbers = #tpu.dot_dimension_numbers<[1], [0], [0], [1], [0, 0, 1, 1], [], []>} : vector<8x640xbf16>, vector<640x256xbf16>, vector<8x256xf32> -> vector<8x256xf32>
    %c0_3 = arith.constant 0 : index
    %c0_4 = arith.constant 0 : index
    %3 = vector.load %arg3[%c0_3, %c0_4] : memref<1x256xf32, #tpu.memory_space<vmem>>, vector<1x256xf32>
    %4 = vector.broadcast %3 : vector<1x256xf32> to vector<8x256xf32>
    %5 = arith.addf %2, %4 : vector<8x256xf32>
    %cst_5 = arith.constant 0.000000e+00 : f32
    %6 = vector.broadcast %cst_5 : f32 to vector<8x256xf32>
    %7 = arith.maximumf %5, %6 : vector<8x256xf32>
    %8 = arith.truncf %7 : vector<8x256xf32> to vector<8x256xbf16>
    %c0_6 = arith.constant 0 : index
    %c0_7 = arith.constant 0 : index
    %9 = vector.load %arg4[%c0_6, %c0_7] : memref<256x128xbf16, #tpu.memory_space<vmem>>, vector<256x128xbf16>
    %cst_8 = arith.constant dense<0.000000e+00> : vector<8x128xf32>
    %10 = tpu.matmul %8, %9, %cst_8 {dimension_numbers = #tpu.dot_dimension_numbers<[1], [0], [0], [1], [0, 0, 1, 1], [], []>} : vector<8x256xbf16>, vector<256x128xbf16>, vector<8x128xf32> -> vector<8x128xf32>
    %c0_9 = arith.constant 0 : index
    %c0_10 = arith.constant 0 : index
    %11 = vector.load %arg5[%c0_9, %c0_10] : memref<1x128xf32, #tpu.memory_space<vmem>>, vector<1x128xf32>
    %12 = vector.broadcast %11 : vector<1x128xf32> to vector<8x128xf32>
    %13 = arith.addf %10, %12 : vector<8x128xf32>
    %cst_11 = arith.constant 0.000000e+00 : f32
    %14 = vector.broadcast %cst_11 : f32 to vector<8x128xf32>
    %15 = arith.maximumf %13, %14 : vector<8x128xf32>
    %16 = arith.truncf %15 : vector<8x128xf32> to vector<8x128xbf16>
    %c0_12 = arith.constant 0 : index
    %c0_13 = arith.constant 0 : index
    %17 = vector.load %arg6[%c0_12, %c0_13] : memref<128x32xbf16, #tpu.memory_space<vmem>>, vector<128x32xbf16>
    %cst_14 = arith.constant dense<0.000000e+00> : vector<8x32xf32>
    %18 = tpu.matmul %16, %17, %cst_14 {dimension_numbers = #tpu.dot_dimension_numbers<[1], [0], [0], [1], [0, 0, 1, 1], [], []>} : vector<8x128xbf16>, vector<128x32xbf16>, vector<8x32xf32> -> vector<8x32xf32>
    %c0_15 = arith.constant 0 : index
    %c0_16 = arith.constant 0 : index
    %19 = vector.load %arg7[%c0_15, %c0_16] : memref<1x32xf32, #tpu.memory_space<vmem>>, vector<1x32xf32>
    %20 = vector.broadcast %19 : vector<1x32xf32> to vector<8x32xf32>
    %21 = arith.addf %18, %20 : vector<8x32xf32>
    %cst_17 = arith.constant 0.000000e+00 : f32
    %22 = vector.broadcast %cst_17 : f32 to vector<8x32xf32>
    %23 = arith.maximumf %21, %22 : vector<8x32xf32>
    %24 = arith.truncf %23 : vector<8x32xf32> to vector<8x32xbf16>
    %c0_18 = arith.constant 0 : index
    %c0_19 = arith.constant 0 : index
    %25 = vector.load %arg8[%c0_18, %c0_19] : memref<32x8xbf16, #tpu.memory_space<vmem>>, vector<32x8xbf16>
    %cst_20 = arith.constant dense<0.000000e+00> : vector<8x8xf32>
    %26 = tpu.matmul %24, %25, %cst_20 {dimension_numbers = #tpu.dot_dimension_numbers<[1], [0], [0], [1], [0, 0, 1, 1], [], []>} : vector<8x32xbf16>, vector<32x8xbf16>, vector<8x8xf32> -> vector<8x8xf32>
    %c0_21 = arith.constant 0 : index
    %c0_22 = arith.constant 0 : index
    %27 = vector.load %arg9[%c0_21, %c0_22] : memref<1x8xf32, #tpu.memory_space<vmem>>, vector<1x8xf32>
    %28 = vector.broadcast %27 : vector<1x8xf32> to vector<8x8xf32>
    %29 = arith.addf %26, %28 : vector<8x8xf32>
    %c0_23 = arith.constant 0 : index
    %c0_24 = arith.constant 0 : index
    %30 = vector.load %arg10[%c0_23, %c0_24] : memref<8x8xf32, #tpu.memory_space<vmem>>, vector<8x8xf32>
    tpu.vector_store %arg10[%c0_23, %c0_24], %29 {strides = array<i32>} : memref<8x8xf32, #tpu.memory_space<vmem>>, vector<8x8xf32>,
    return
  }
  func.func @transform_0(%arg0: i32) -> (i32, i32) {
    %c0_i32 = arith.constant 0 : i32
    %c0_i32_0 = arith.constant 0 : i32
    return %arg0, %c0_i32 : i32, i32
  }
  func.func @transform_1(%arg0: i32) -> (i32, i32) {
    %c0_i32 = arith.constant 0 : i32
    %c0_i32_0 = arith.constant 0 : i32
    %c0_i32_1 = arith.constant 0 : i32
    return %c0_i32, %c0_i32_0 : i32, i32
  }
  func.func @transform_2(%arg0: i32) -> (i32, i32) {
    %c0_i32 = arith.constant 0 : i32
    %c0_i32_0 = arith.constant 0 : i32
    %c0_i32_1 = arith.constant 0 : i32
    return %c0_i32, %c0_i32_0 : i32, i32
  }
  func.func @transform_3(%arg0: i32) -> (i32, i32) {
    %c0_i32 = arith.constant 0 : i32
    %c0_i32_0 = arith.constant 0 : i32
    %c0_i32_1 = arith.constant 0 : i32
    return %c0_i32, %c0_i32_0 : i32, i32
  }
  func.func @transform_4(%arg0: i32) -> (i32, i32) {
    %c0_i32 = arith.constant 0 : i32
    %c0_i32_0 = arith.constant 0 : i32
    %c0_i32_1 = arith.constant 0 : i32
    return %c0_i32, %c0_i32_0 : i32, i32
  }
  func.func @transform_5(%arg0: i32) -> (i32, i32) {
    %c0_i32 = arith.constant 0 : i32
    %c0_i32_0 = arith.constant 0 : i32
    %c0_i32_1 = arith.constant 0 : i32
    return %c0_i32, %c0_i32_0 : i32, i32
  }
  func.func @transform_6(%arg0: i32) -> (i32, i32) {
    %c0_i32 = arith.constant 0 : i32
    %c0_i32_0 = arith.constant 0 : i32
    %c0_i32_1 = arith.constant 0 : i32
    return %c0_i32, %c0_i32_0 : i32, i32
  }
  func.func @transform_7(%arg0: i32) -> (i32, i32) {
    %c0_i32 = arith.constant 0 : i32
    %c0_i32_0 = arith.constant 0 : i32
    %c0_i32_1 = arith.constant 0 : i32
    return %c0_i32, %c0_i32_0 : i32, i32
  }
  func.func @transform_8(%arg0: i32) -> (i32, i32) {
    %c0_i32 = arith.constant 0 : i32
    %c0_i32_0 = arith.constant 0 : i32
    %c0_i32_1 = arith.constant 0 : i32
    return %c0_i32, %c0_i32_0 : i32, i32
  }
  func.func @transform_9(%arg0: i32) -> (i32, i32) {
    %c0_i32 = arith.constant 0 : i32
    %c0_i32_0 = arith.constant 0 : i32
    return %arg0, %c0_i32 : i32, i32
  }
}

</mosaic_0001>

<llo_original>
// kernel: netmlp_forward.1
$region0: #{netmlp_forward.1}
  #allocation0 [shape = 'u32[]', space=smem, size = 0x4, offset = 0x4, fixed_abs, tag = 'smem constant byte address 0x4 - core index']
  #allocation1 [shape = 'u32[144,128]{1,0:T(1,128)}', space=vmem, size = 0x12000, scoped, tag = 'internal scratch']
  %s0 = inlined_call_operand.vmem [shape: bf16[8,640], index: 0, kind: input, shape index: {}]
  %s1 = inlined_call_operand.vmem [shape: bf16[640,256], index: 1, kind: input, shape index: {}]
  %s2 = inlined_call_operand.vmem [shape: f32[1,256], index: 2, kind: input, shape index: {}]
  %s3 = inlined_call_operand.vmem [shape: bf16[256,128], index: 3, kind: input, shape index: {}]
  %s4 = inlined_call_operand.vmem [shape: f32[1,128], index: 4, kind: input, shape index: {}]
  %s5 = inlined_call_operand.vmem [shape: bf16[128,32], index: 5, kind: input, shape index: {}]
  %s6 = inlined_call_operand.vmem [shape: f32[1,32], index: 6, kind: input, shape index: {}]
  %s7 = inlined_call_operand.vmem [shape: bf16[32,8], index: 7, kind: input, shape index: {}]
  %s8 = inlined_call_operand.vmem [shape: f32[1,8], index: 8, kind: input, shape index: {}]
  %s9 = inlined_call_operand.vmem [shape: f32[8,8], index: 9, kind: output, shape index: {}]
  %s10 = sld [smem:[#allocation0]]
  $region46: #{netmlp_forward.1} parent=0
    _
  %s12 = ssub.s32 1, %s10
  %s13 = scalar_select 0, %s12, %s10
  // Predicated region
  $region2: #{netmlp_forward.1} parent=0 // pred_check
    _
  $region3: #{netmlp_forward.1} parent=0 // pred_check_branch
    %15 = sbr.rel (0) target = $region5
  $region4: #{netmlp_forward.1} parent=0 // pred_region
    _
  $region5: #{netmlp_forward.1} parent=0 // pred_fallthru
    _
  // Predicated region
  $region6: #{netmlp_forward.1} parent=0 // pred_check
    _
  $region7: #{netmlp_forward.1} parent=0 // pred_check_branch
    %17 = sbr.rel (0) target = $region9
  $region8: #{netmlp_forward.1} parent=0 // pred_region
    _
  $region9: #{netmlp_forward.1} parent=0 // pred_fallthru
    _
  // Predicated region
  $region10: #{netmlp_forward.1} parent=0 // pred_check
    _
  $region11: #{netmlp_forward.1} parent=0 // pred_check_branch
    %19 = sbr.rel (0) target = $region13
  $region12: #{netmlp_forward.1} parent=0 // pred_region
    _
  $region13: #{netmlp_forward.1} parent=0 // pred_fallthru
    _
  // Predicated region
  $region14: #{netmlp_forward.1} parent=0 // pred_check
    _
  $region15: #{netmlp_forward.1} parent=0 // pred_check_branch
    %21 = sbr.rel (0) target = $region17
  $region16: #{netmlp_forward.1} parent=0 // pred_region
    _
  $region17: #{netmlp_forward.1} parent=0 // pred_fallthru
    _
  // Predicated region
  $region18: #{netmlp_forward.1} parent=0 // pred_check
    _
  $region19: #{netmlp_forward.1} parent=0 // pred_check_branch
    %23 = sbr.rel (0) target = $region21
  $region20: #{netmlp_forward.1} parent=0 // pred_region
    _
  $region21: #{netmlp_forward.1} parent=0 // pred_fallthru
    _
  // Predicated region
  $region22: #{netmlp_forward.1} parent=0 // pred_check
    _
  $region23: #{netmlp_forward.1} parent=0 // pred_check_branch
    %25 = sbr.rel (0) target = $region25
  $region24: #{netmlp_forward.1} parent=0 // pred_region
    _
  $region25: #{netmlp_forward.1} parent=0 // pred_fallthru
    _
  // Predicated region
  $region26: #{netmlp_forward.1} parent=0 // pred_check
    _
  $region27: #{netmlp_forward.1} parent=0 // pred_check_branch
    %27 = sbr.rel (0) target = $region29
  $region28: #{netmlp_forward.1} parent=0 // pred_region
    _
  $region29: #{netmlp_forward.1} parent=0 // pred_fallthru
    _
  // Predicated region
  $region30: #{netmlp_forward.1} parent=0 // pred_check
    _
  $region31: #{netmlp_forward.1} parent=0 // pred_check_branch
    %29 = sbr.rel (0) target = $region33
  $region32: #{netmlp_forward.1} parent=0 // pred_region
    _
  $region33: #{netmlp_forward.1} parent=0 // pred_fallthru
    _
  // Predicated region
  $region34: #{netmlp_forward.1} parent=0 // pred_check
    _
  $region35: #{netmlp_forward.1} parent=0 // pred_check_branch
    %31 = sbr.rel (0) target = $region37
  $region36: #{netmlp_forward.1} parent=0 // pred_region
    _
  $region37: #{netmlp_forward.1} parent=0 // pred_fallthru
    _
  %v33 = vld [vmem:[%s0] sm:$0xff]
  %v34 = vld [vmem:[%s0 + $0x8] sm:$0xff]
  %v35 = vld [vmem:[%s0 + $0x10] sm:$0xf]
  %v36 = vld [vmem:[%s1] sm:$0xff]
  %v37 = vld [vmem:[%s1 + $0x8] sm:$0xff]
  %v38 = vld [vmem:[%s1 + $0x10] sm:$0xff]
  %v39 = vld [vmem:[%s1 + $0x18] sm:$0xff]
  %v40 = vld [vmem:[%s1 + $0x20] sm:$0xff]
  %v41 = vld [vmem:[%s1 + $0x28] sm:$0xff]
  %v42 = vld [vmem:[%s1 + $0x30] sm:$0xff]
  %v43 = vld [vmem:[%s1 + $0x38] sm:$0xff]
  %v44 = vld [vmem:[%s1 + $0x40] sm:$0xff]
  %v45 = vld [vmem:[%s1 + $0x48] sm:$0xff]
  %v46 = vld [vmem:[%s1 + $0x50] sm:$0xff]
  %v47 = vld [vmem:[%s1 + $0x58] sm:$0xff]
  %v48 = vld [vmem:[%s1 + $0x60] sm:$0xff]
  %v49 = vld [vmem:[%s1 + $0x68] sm:$0xff]
  %v50 = vld [vmem:[%s1 + $0x70] sm:$0xff]
  %v51 = vld [vmem:[%s1 + $0x78] sm:$0xff]
  %v52 = vld [vmem:[%s1 + $0x80] sm:$0xff]
  %v53 = vld [vmem:[%s1 + $0x88] sm:$0xff]
  %v54 = vld [vmem:[%s1 + $0x90] sm:$0xff]
  %v55 = vld [vmem:[%s1 + $0x98] sm:$0xff]
  %v56 = vld [vmem:[%s1 + $0xa0] sm:$0xff]
  %v57 = vld [vmem:[%s1 + $0xa8] sm:$0xff]
  %v58 = vld [vmem:[%s1 + $0xb0] sm:$0xff]
  %v59 = vld [vmem:[%s1 + $0xb8] sm:$0xff]
  %v60 = vld [vmem:[%s1 + $0xc0] sm:$0xff]
  %v61 = vld [vmem:[%s1 + $0xc8] sm:$0xff]
  %v62 = vld [vmem:[%s1 + $0xd0] sm:$0xff]
  %v63 = vld [vmem:[%s1 + $0xd8] sm:$0xff]
  %v64 = vld [vmem:[%s1 + $0xe0] sm:$0xff]
  %v65 = vld [vmem:[%s1 + $0xe8] sm:$0xff]
  %v66 = vld [vmem:[%s1 + $0xf0] sm:$0xff]
  %v67 = vld [vmem:[%s1 + $0xf8] sm:$0xff]
  %v68 = vld [vmem:[%s1 + $0x100] sm:$0xff]
  %v69 = vld [vmem:[%s1 + $0x108] sm:$0xff]
  %v70 = vld [vmem:[%s1 + $0x110] sm:$0xff]
  %v71 = vld [vmem:[%s1 + $0x118] sm:$0xff]
  %v72 = vld [vmem:[%s1 + $0x120] sm:$0xff]
  %v73 = vld [vmem:[%s1 + $0x128] sm:$0xff]
  %v74 = vld [vmem:[%s1 + $0x130] sm:$0xff]
  %v75 = vld [vmem:[%s1 + $0x138] sm:$0xff]
  %v76 = vld [vmem:[%s1 + $0x140] sm:$0xff]
  %v77 = vld [vmem:[%s1 + $0x148] sm:$0xff]
  %v78 = vld [vmem:[%s1 + $0x150] sm:$0xff]
  %v79 = vld [vmem:[%s1 + $0x158] sm:$0xff]
  %v80 = vld [vmem:[%s1 + $0x160] sm:$0xff]
  %v81 = vld [vmem:[%s1 + $0x168] sm:$0xff]
  %v82 = vld [vmem:[%s1 + $0x170] sm:$0xff]
  %v83 = vld [vmem:[%s1 + $0x178] sm:$0xff]
  %v84 = vld [vmem:[%s1 + $0x180] sm:$0xff]
  %v85 = vld [vmem:[%s1 + $0x188] sm:$0xff]
  %v86 = vld [vmem:[%s1 + $0x190] sm:$0xff]
  %v87 = vld [vmem:[%s1 + $0x198] sm:$0xff]
  %v88 = vld [vmem:[%s1 + $0x1a0] sm:$0xff]
  %v89 = vld [vmem:[%s1 + $0x1a8] sm:$0xff]
  %v90 = vld [vmem:[%s1 + $0x1b0] sm:$0xff]
  %v91 = vld [vmem:[%s1 + $0x1b8] sm:$0xff]
  %v92 = vld [vmem:[%s1 + $0x1c0] sm:$0xff]
  %v93 = vld [vmem:[%s1 + $0x1c8] sm:$0xff]
  %v94 = vld [vmem:[%s1 + $0x1d0] sm:$0xff]
  %v95 = vld [vmem:[%s1 + $0x1d8] sm:$0xff]
  %v96 = vld [vmem:[%s1 + $0x1e0] sm:$0xff]
  %v97 = vld [vmem:[%s1 + $0x1e8] sm:$0xff]
  %v98 = vld [vmem:[%s1 + $0x1f0] sm:$0xff]
  %v99 = vld [vmem:[%s1 + $0x1f8] sm:$0xff]
  %v100 = vld [vmem:[%s1 + $0x200] sm:$0xff]
  %v101 = vld [vmem:[%s1 + $0x208] sm:$0xff]
  %v102 = vld [vmem:[%s1 + $0x210] sm:$0xff]
  %v103 = vld [vmem:[%s1 + $0x218] sm:$0xff]
  %v104 = vld [vmem:[%s1 + $0x220] sm:$0xff]
  %v105 = vld [vmem:[%s1 + $0x228] sm:$0xff]
  %v106 = vld [vmem:[%s1 + $0x230] sm:$0xff]
  %v107 = vld [vmem:[%s1 + $0x238] sm:$0xff]
  %v108 = vld [vmem:[%s1 + $0x240] sm:$0xff]
  %v109 = vld [vmem:[%s1 + $0x248] sm:$0xff]
  %v110 = vld [vmem:[%s1 + $0x250] sm:$0xff]
  %v111 = vld [vmem:[%s1 + $0x258] sm:$0xff]
  %v112 = vld [vmem:[%s1 + $0x260] sm:$0xff]
  %v113 = vld [vmem:[%s1 + $0x268] sm:$0xff]
  %v114 = vld [vmem:[%s1 + $0x270] sm:$0xff]
  %v115 = vld [vmem:[%s1 + $0x278] sm:$0xff]
  %v116 = vld [vmem:[%s2] sm:$0x3]
  %v118 = vlaneseq
  %v119 = vshrl.u32 %v118, 7
  %v120 = vsub.s32 0, %v119
  %v121 = vrot.slane %v116, %v120
  %v122 = vlaneseq
  %v123 = vshrl.u32 %v122, 7
  %v124 = vsub.s32 1, %v123
  %v125 = vrot.slane %v116, %v124
  %v131 = vunpack.c.l.b16 %v33
  %v132 = vunpack.c.h.b16 %v33
  %v133 = vunpack.c.l.b16 %v34
  %v134 = vunpack.c.h.b16 %v34
  %v135 = vunpack.c.l.b16 %v35
  %v136 = vpack.c.b16 %v131, %v131
  %v137 = vpack.c.b16 %v132, %v132
  %v138 = vpack.c.b16 %v133, %v133
  %v139 = vpack.c.b16 %v134, %v134
  %v140 = vpack.c.b16 %v135, %v135
  %v226 = vunpack.c.l.b16 %v36
  %v227 = vunpack.c.h.b16 %v36
  %v228 = vunpack.c.l.b16 %v37
  %v229 = vunpack.c.h.b16 %v37
  %v230 = vunpack.c.l.b16 %v38
  %v231 = vunpack.c.h.b16 %v38
  %v232 = vunpack.c.l.b16 %v39
  %v233 = vunpack.c.h.b16 %v39
  %v234 = vunpack.c.l.b16 %v40
  %v235 = vunpack.c.h.b16 %v40
  %v236 = vunpack.c.l.b16 %v41
  %v237 = vunpack.c.h.b16 %v41
  %v238 = vunpack.c.l.b16 %v42
  %v239 = vunpack.c.h.b16 %v42
  %v240 = vunpack.c.l.b16 %v43
  %v241 = vunpack.c.h.b16 %v43
  %v242 = vunpack.c.l.b16 %v44
  %v243 = vunpack.c.h.b16 %v44
  %v244 = vunpack.c.l.b16 %v45
  %v245 = vunpack.c.h.b16 %v45
  %v246 = vunpack.c.l.b16 %v46
  %v247 = vunpack.c.h.b16 %v46
  %v248 = vunpack.c.l.b16 %v47
  %v249 = vunpack.c.h.b16 %v47
  %v250 = vunpack.c.l.b16 %v48
  %v251 = vunpack.c.h.b16 %v48
  %v252 = vunpack.c.l.b16 %v49
  %v253 = vunpack.c.h.b16 %v49
  %v254 = vunpack.c.l.b16 %v50
  %v255 = vunpack.c.h.b16 %v50
  %v256 = vunpack.c.l.b16 %v51
  %v257 = vunpack.c.h.b16 %v51
  %v258 = vunpack.c.l.b16 %v52
  %v259 = vunpack.c.h.b16 %v52
  %v260 = vunpack.c.l.b16 %v53
  %v261 = vunpack.c.h.b16 %v53
  %v262 = vunpack.c.l.b16 %v54
  %v263 = vunpack.c.h.b16 %v54
  %v264 = vunpack.c.l.b16 %v55
  %v265 = vunpack.c.h.b16 %v55
  %v266 = vunpack.c.l.b16 %v56
  %v267 = vunpack.c.h.b16 %v56
  %v268 = vunpack.c.l.b16 %v57
  %v269 = vunpack.c.h.b16 %v57
  %v270 = vunpack.c.l.b16 %v58
  %v271 = vunpack.c.h.b16 %v58
  %v272 = vunpack.c.l.b16 %v59
  %v273 = vunpack.c.h.b16 %v59
  %v274 = vunpack.c.l.b16 %v60
  %v275 = vunpack.c.h.b16 %v60
  %v276 = vunpack.c.l.b16 %v61
  %v277 = vunpack.c.h.b16 %v61
  %v278 = vunpack.c.l.b16 %v62
  %v279 = vunpack.c.h.b16 %v62
  %v280 = vunpack.c.l.b16 %v63
  %v281 = vunpack.c.h.b16 %v63
  %v282 = vunpack.c.l.b16 %v64
  %v283 = vunpack.c.h.b16 %v64
  %v284 = vunpack.c.l.b16 %v65
  %v285 = vunpack.c.h.b16 %v65
  %v286 = vunpack.c.l.b16 %v66
  %v287 = vunpack.c.h.b16 %v66
  %v288 = vunpack.c.l.b16 %v67
  %v289 = vunpack.c.h.b16 %v67
  %v290 = vunpack.c.l.b16 %v68
  %v291 = vunpack.c.h.b16 %v68
  %v292 = vunpack.c.l.b16 %v69
  %v293 = vunpack.c.h.b16 %v69
  %v294 = vunpack.c.l.b16 %v70
  %v295 = vunpack.c.h.b16 %v70
  %v296 = vunpack.c.l.b16 %v71
  %v297 = vunpack.c.h.b16 %v71
  %v298 = vunpack.c.l.b16 %v72
  %v299 = vunpack.c.h.b16 %v72
  %v300 = vunpack.c.l.b16 %v73
  %v301 = vunpack.c.h.b16 %v73
  %v302 = vunpack.c.l.b16 %v74
  %v303 = vunpack.c.h.b16 %v74
  %v304 = vunpack.c.l.b16 %v75
  %v305 = vunpack.c.h.b16 %v75
  %v306 = vunpack.c.l.b16 %v76
  %v307 = vunpack.c.h.b16 %v76
  %v308 = vunpack.c.l.b16 %v77
  %v309 = vunpack.c.h.b16 %v77
  %v310 = vunpack.c.l.b16 %v78
  %v311 = vunpack.c.h.b16 %v78
  %v312 = vunpack.c.l.b16 %v79
  %v313 = vunpack.c.h.b16 %v79
  %v314 = vunpack.c.l.b16 %v80
  %v315 = vunpack.c.h.b16 %v80
  %v316 = vunpack.c.l.b16 %v81
  %v317 = vunpack.c.h.b16 %v81
  %v318 = vunpack.c.l.b16 %v82
  %v319 = vunpack.c.h.b16 %v82
  %v320 = vunpack.c.l.b16 %v83
  %v321 = vunpack.c.h.b16 %v83
  %v322 = vunpack.c.l.b16 %v84
  %v323 = vunpack.c.h.b16 %v84
  %v324 = vunpack.c.l.b16 %v85
  %v325 = vunpack.c.h.b16 %v85
  %v326 = vunpack.c.l.b16 %v86
  %v327 = vunpack.c.h.b16 %v86
  %v328 = vunpack.c.l.b16 %v87
  %v329 = vunpack.c.h.b16 %v87
  %v330 = vunpack.c.l.b16 %v88
  %v331 = vunpack.c.h.b16 %v88
  %v332 = vunpack.c.l.b16 %v89
  %v333 = vunpack.c.h.b16 %v89
  %v334 = vunpack.c.l.b16 %v90
  %v335 = vunpack.c.h.b16 %v90
  %v336 = vunpack.c.l.b16 %v91
  %v337 = vunpack.c.h.b16 %v91
  %v338 = vunpack.c.l.b16 %v92
  %v339 = vunpack.c.h.b16 %v92
  %v340 = vunpack.c.l.b16 %v93
  %v341 = vunpack.c.h.b16 %v93
  %v342 = vunpack.c.l.b16 %v94
  %v343 = vunpack.c.h.b16 %v94
  %v344 = vunpack.c.l.b16 %v95
  %v345 = vunpack.c.h.b16 %v95
  %v346 = vunpack.c.l.b16 %v96
  %v347 = vunpack.c.h.b16 %v96
  %v348 = vunpack.c.l.b16 %v97
  %v349 = vunpack.c.h.b16 %v97
  %v350 = vunpack.c.l.b16 %v98
  %v351 = vunpack.c.h.b16 %v98
  %v352 = vunpack.c.l.b16 %v99
  %v353 = vunpack.c.h.b16 %v99
  %v354 = vunpack.c.l.b16 %v100
  %v355 = vunpack.c.h.b16 %v100
  %v356 = vunpack.c.l.b16 %v101
  %v357 = vunpack.c.h.b16 %v101
  %v358 = vunpack.c.l.b16 %v102
  %v359 = vunpack.c.h.b16 %v102
  %v360 = vunpack.c.l.b16 %v103
  %v361 = vunpack.c.h.b16 %v103
  %v362 = vunpack.c.l.b16 %v104
  %v363 = vunpack.c.h.b16 %v104
  %v364 = vunpack.c.l.b16 %v105
  %v365 = vunpack.c.h.b16 %v105
  %v366 = vunpack.c.l.b16 %v106
  %v367 = vunpack.c.h.b16 %v106
  %v368 = vunpack.c.l.b16 %v107
  %v369 = vunpack.c.h.b16 %v107
  %v370 = vunpack.c.l.b16 %v108
  %v371 = vunpack.c.h.b16 %v108
  %v372 = vunpack.c.l.b16 %v109
  %v373 = vunpack.c.h.b16 %v109
  %v374 = vunpack.c.l.b16 %v110
  %v375 = vunpack.c.h.b16 %v110
  %v376 = vunpack.c.l.b16 %v111
  %v377 = vunpack.c.h.b16 %v111
  %v378 = vunpack.c.l.b16 %v112
  %v379 = vunpack.c.h.b16 %v112
  %v380 = vunpack.c.l.b16 %v113
  %v381 = vunpack.c.h.b16 %v113
  %v382 = vunpack.c.l.b16 %v114
  %v383 = vunpack.c.h.b16 %v114
  %v384 = vunpack.c.l.b16 %v115
  %v385 = vunpack.c.h.b16 %v115
  %v386 = vpack.c.b16 %v228, %v226
  %v387 = vpack.c.b16 %v229, %v227
  %v388 = vpack.c.b16 %v232, %v230
  %v389 = vpack.c.b16 %v233, %v231
  %v390 = vpack.c.b16 %v236, %v234
  %v391 = vpack.c.b16 %v237, %v235
  %v392 = vpack.c.b16 %v240, %v238
  %v393 = vpack.c.b16 %v241, %v239
  %v394 = vpack.c.b16 %v244, %v242
  %v395 = vpack.c.b16 %v245, %v243
  %v396 = vpack.c.b16 %v248, %v246
  %v397 = vpack.c.b16 %v249, %v247
  %v398 = vpack.c.b16 %v252, %v250
  %v399 = vpack.c.b16 %v253, %v251
  %v400 = vpack.c.b16 %v256, %v254
  %v401 = vpack.c.b16 %v257, %v255
  %v402 = vpack.c.b16 %v260, %v258
  %v403 = vpack.c.b16 %v261, %v259
  %v404 = vpack.c.b16 %v264, %v262
  %v405 = vpack.c.b16 %v265, %v263
  %v406 = vpack.c.b16 %v268, %v266
  %v407 = vpack.c.b16 %v269, %v267
  %v408 = vpack.c.b16 %v272, %v270
  %v409 = vpack.c.b16 %v273, %v271
  %v410 = vpack.c.b16 %v276, %v274
  %v411 = vpack.c.b16 %v277, %v275
  %v412 = vpack.c.b16 %v280, %v278
  %v413 = vpack.c.b16 %v281, %v279
  %v414 = vpack.c.b16 %v284, %v282
  %v415 = vpack.c.b16 %v285, %v283
  %v416 = vpack.c.b16 %v288, %v286
  %v417 = vpack.c.b16 %v289, %v287
  %v418 = vpack.c.b16 %v292, %v290
  %v419 = vpack.c.b16 %v293, %v291
  %v420 = vpack.c.b16 %v296, %v294
  %v421 = vpack.c.b16 %v297, %v295
  %v422 = vpack.c.b16 %v300, %v298
  %v423 = vpack.c.b16 %v301, %v299
  %v424 = vpack.c.b16 %v304, %v302
  %v425 = vpack.c.b16 %v305, %v303
  %v426 = vpack.c.b16 %v308, %v306
  %v427 = vpack.c.b16 %v309, %v307
  %v428 = vpack.c.b16 %v312, %v310
  %v429 = vpack.c.b16 %v313, %v311
  %v430 = vpack.c.b16 %v316, %v314
  %v431 = vpack.c.b16 %v317, %v315
  %v432 = vpack.c.b16 %v320, %v318
  %v433 = vpack.c.b16 %v321, %v319
  %v434 = vpack.c.b16 %v324, %v322
  %v435 = vpack.c.b16 %v325, %v323
  %v436 = vpack.c.b16 %v328, %v326
  %v437 = vpack.c.b16 %v329, %v327
  %v438 = vpack.c.b16 %v332, %v330
  %v439 = vpack.c.b16 %v333, %v331
  %v440 = vpack.c.b16 %v336, %v334
  %v441 = vpack.c.b16 %v337, %v335
  %v442 = vpack.c.b16 %v340, %v338
  %v443 = vpack.c.b16 %v341, %v339
  %v444 = vpack.c.b16 %v344, %v342
  %v445 = vpack.c.b16 %v345, %v343
  %v446 = vpack.c.b16 %v348, %v346
  %v447 = vpack.c.b16 %v349, %v347
  %v448 = vpack.c.b16 %v352, %v350
  %v449 = vpack.c.b16 %v353, %v351
  %v450 = vpack.c.b16 %v356, %v354
  %v451 = vpack.c.b16 %v357, %v355
  %v452 = vpack.c.b16 %v360, %v358
  %v453 = vpack.c.b16 %v361, %v359
  %v454 = vpack.c.b16 %v364, %v362
  %v455 = vpack.c.b16 %v365, %v363
  %v456 = vpack.c.b16 %v368, %v366
  %v457 = vpack.c.b16 %v369, %v367
  %v458 = vpack.c.b16 %v372, %v370
  %v459 = vpack.c.b16 %v373, %v371
  %v460 = vpack.c.b16 %v376, %v374
  %v461 = vpack.c.b16 %v377, %v375
  %v462 = vpack.c.b16 %v380, %v378
  %v463 = vpack.c.b16 %v381, %v379
  %v464 = vpack.c.b16 %v384, %v382
  %v465 = vpack.c.b16 %v385, %v383
  %546 = vmatprep.subr.bf16.mxu0 %v387
  %547 = vmatpush1.bf16.msra.mxu0 %v386
  %548 = vmatprep.subr.bf16.mxu0 %v389
  %549 = vmatpush1.bf16.msra.mxu0 %v388
  %550 = vmatprep.subr.bf16.mxu0 %v391
  %551 = vmatpush1.bf16.msra.mxu0 %v390
  %552 = vmatprep.subr.bf16.mxu0 %v393
  %553 = vmatpush1.bf16.msra.mxu0 %v392
  %554 = vmatprep.subr.bf16.mxu0 %v395
  %555 = vmatpush1.bf16.msra.mxu0 %v394
  %556 = vmatprep.subr.bf16.mxu0 %v397
  %557 = vmatpush1.bf16.msra.mxu0 %v396
  %558 = vmatprep.subr.bf16.mxu0 %v399
  %559 = vmatpush1.bf16.msra.mxu0 %v398
  %560 = vmatprep.subr.bf16.mxu0 %v401
  %561 = vmatpush1.bf16.msra.mxu0 %v400
  %562 = vmatprep.subr.bf16.mxu0 %v403
  %563 = vmatpush1.bf16.msra.mxu0 %v402
  %564 = vmatprep.subr.bf16.mxu0 %v405
  %565 = vmatpush1.bf16.msra.mxu0 %v404
  %566 = vmatprep.subr.bf16.mxu0 %v407
  %567 = vmatpush1.bf16.msra.mxu0 %v406
  %568 = vmatprep.subr.bf16.mxu0 %v409
  %569 = vmatpush1.bf16.msra.mxu0 %v408
  %570 = vmatprep.subr.bf16.mxu0 %v411
  %571 = vmatpush1.bf16.msra.mxu0 %v410
  %572 = vmatprep.subr.bf16.mxu0 %v413
  %573 = vmatpush1.bf16.msra.mxu0 %v412
  %574 = vmatprep.subr.bf16.mxu0 %v415
  %575 = vmatpush1.bf16.msra.mxu0 %v414
  %576 = vmatprep.subr.bf16.mxu0 %v417
  %577 = vmatpush1.bf16.msra.mxu0 %v416
  %578 = vmatprep.mubr.bf16.mxu0 %v137
  %579 = vmatmul.mubr.bf16.gmra.mrb[0].mxu0 %v136
  %v580 = vpop.f32.mrb[0].mxu0
  %v581 = vadd.f32 %v121, %v580
  %v582 = vpop.f32.mrb[0].mxu0
  %v583 = vadd.f32 %v125, %v582
  %v584 = vpop.f32.mrb[0].mxu0
  %v585 = vpop.f32.mrb[0].mxu0
  %586 = vdwg.mxu0
  %587 = vmatprep.subr.bf16.mxu0 %v419
  %588 = vmatpush1.bf16.msra.mxu0 %v418
  %589 = vmatprep.subr.bf16.mxu0 %v421
  %590 = vmatpush1.bf16.msra.mxu0 %v420
  %591 = vmatprep.subr.bf16.mxu0 %v423
  %592 = vmatpush1.bf16.msra.mxu0 %v422
  %593 = vmatprep.subr.bf16.mxu0 %v425
  %594 = vmatpush1.bf16.msra.mxu0 %v424
  %595 = vmatprep.subr.bf16.mxu0 %v427
  %596 = vmatpush1.bf16.msra.mxu0 %v426
  %597 = vmatprep.subr.bf16.mxu0 %v429
  %598 = vmatpush1.bf16.msra.mxu0 %v428
  %599 = vmatprep.subr.bf16.mxu0 %v431
  %600 = vmatpush1.bf16.msra.mxu0 %v430
  %601 = vmatprep.subr.bf16.mxu0 %v433
  %602 = vmatpush1.bf16.msra.mxu0 %v432
  %603 = vmatprep.subr.bf16.mxu0 %v435
  %604 = vmatpush1.bf16.msra.mxu0 %v434
  %605 = vmatprep.subr.bf16.mxu0 %v437
  %606 = vmatpush1.bf16.msra.mxu0 %v436
  %607 = vmatprep.subr.bf16.mxu0 %v439
  %608 = vmatpush1.bf16.msra.mxu0 %v438
  %609 = vmatprep.subr.bf16.mxu0 %v441
  %610 = vmatpush1.bf16.msra.mxu0 %v440
  %611 = vmatprep.subr.bf16.mxu0 %v443
  %612 = vmatpush1.bf16.msra.mxu0 %v442
  %613 = vmatprep.subr.bf16.mxu0 %v445
  %614 = vmatpush1.bf16.msra.mxu0 %v444
  %615 = vmatprep.subr.bf16.mxu0 %v447
  %616 = vmatpush1.bf16.msra.mxu0 %v446
  %617 = vmatprep.subr.bf16.mxu0 %v449
  %618 = vmatpush1.bf16.msra.mxu0 %v448
  %619 = vmatprep.mubr.bf16.mxu0 %v139
  %620 = vmatmul.mubr.bf16.gmra.mrb[0].mxu0 %v138
  %v621 = vpop.f32.mrb[0].mxu0
  %v622 = vadd.f32 %v581, %v621
  %v623 = vpop.f32.mrb[0].mxu0
  %v624 = vadd.f32 %v583, %v623
  %v625 = vpop.f32.mrb[0].mxu0
  %v626 = vpop.f32.mrb[0].mxu0
  %627 = vdwg.mxu0
  %628 = vmatprep.subr.bf16.mxu0 %v451
  %629 = vmatpush1.bf16.msra.mxu0 %v450
  %630 = vmatprep.subr.bf16.mxu0 %v453
  %631 = vmatpush1.bf16.msra.mxu0 %v452
  %632 = vmatprep.subr.bf16.mxu0 %v455
  %633 = vmatpush1.bf16.msra.mxu0 %v454
  %634 = vmatprep.subr.bf16.mxu0 %v457
  %635 = vmatpush1.bf16.msra.mxu0 %v456
  %636 = vmatprep.subr.bf16.mxu0 %v459
  %637 = vmatpush1.bf16.msra.mxu0 %v458
  %638 = vmatprep.subr.bf16.mxu0 %v461
  %639 = vmatpush1.bf16.msra.mxu0 %v460
  %640 = vmatprep.subr.bf16.mxu0 %v463
  %641 = vmatpush1.bf16.msra.mxu0 %v462
  %642 = vmatprep.subr.bf16.mxu0 %v465
  %643 = vmatpush1.bf16.msra.mxu0 %v464
  %644 = vmatprep.subr.bf16.mxu0 0
  %645 = vmatpush1.bf16.msra.mxu0 0
  %646 = vmatprep.subr.bf16.mxu0 0
  %647 = vmatpush1.bf16.msra.mxu0 0
  %648 = vmatprep.subr.bf16.mxu0 0
  %649 = vmatpush1.bf16.msra.mxu0 0
  %650 = vmatprep.subr.bf16.mxu0 0
  %651 = vmatpush1.bf16.msra.mxu0 0
  %652 = vmatprep.subr.bf16.mxu0 0
  %653 = vmatpush1.bf16.msra.mxu0 0
  %654 = vmatprep.subr.bf16.mxu0 0
  %655 = vmatpush1.bf16.msra.mxu0 0
  %656 = vmatprep.subr.bf16.mxu0 0
  %657 = vmatpush1.bf16.msra.mxu0 0
  %658 = vmatprep.subr.bf16.mxu0 0
  %659 = vmatpush1.bf16.msra.mxu0 0
  %660 = vmatprep.mubr.bf16.mxu0 0
  %661 = vmatmul.mubr.bf16.gmra.mrb[0].mxu0 %v140
  %v662 = vpop.f32.mrb[0].mxu0
  %v663 = vadd.f32 %v622, %v662
  %v664 = vpop.f32.mrb[0].mxu0
  %v665 = vadd.f32 %v624, %v664
  %v666 = vpop.f32.mrb[0].mxu0
  %v667 = vpop.f32.mrb[0].mxu0
  %668 = vdwg.mxu0
  %v669 = vmax.f32 %v663, 0.0
  %v670 = vmax.f32 %v665, 0.0
  %v671 = vpack.c.bf16 %v669, %v669
  %v672 = vpack.c.bf16 %v670, %v670
  %v673 = vld [vmem:[%s3] sm:$0xf]
  %v674 = vld [vmem:[%s3 + $0x4] sm:$0xf]
  %v675 = vld [vmem:[%s3 + $0x8] sm:$0xf]
  %v676 = vld [vmem:[%s3 + $0xc] sm:$0xf]
  %v677 = vld [vmem:[%s3 + $0x10] sm:$0xf]
  %v678 = vld [vmem:[%s3 + $0x14] sm:$0xf]
  %v679 = vld [vmem:[%s3 + $0x18] sm:$0xf]
  %v680 = vld [vmem:[%s3 + $0x1c] sm:$0xf]
  %v681 = vld [vmem:[%s3 + $0x20] sm:$0xf]
  %v682 = vld [vmem:[%s3 + $0x24] sm:$0xf]
  %v683 = vld [vmem:[%s3 + $0x28] sm:$0xf]
  %v684 = vld [vmem:[%s3 + $0x2c] sm:$0xf]
  %v685 = vld [vmem:[%s3 + $0x30] sm:$0xf]
  %v686 = vld [vmem:[%s3 + $0x34] sm:$0xf]
  %v687 = vld [vmem:[%s3 + $0x38] sm:$0xf]
  %v688 = vld [vmem:[%s3 + $0x3c] sm:$0xf]
  %v689 = vld [vmem:[%s3 + $0x40] sm:$0xf]
  %v690 = vld [vmem:[%s3 + $0x44] sm:$0xf]
  %v691 = vld [vmem:[%s3 + $0x48] sm:$0xf]
  %v692 = vld [vmem:[%s3 + $0x4c] sm:$0xf]
  %v693 = vld [vmem:[%s3 + $0x50] sm:$0xf]
  %v694 = vld [vmem:[%s3 + $0x54] sm:$0xf]
  %v695 = vld [vmem:[%s3 + $0x58] sm:$0xf]
  %v696 = vld [vmem:[%s3 + $0x5c] sm:$0xf]
  %v697 = vld [vmem:[%s3 + $0x60] sm:$0xf]
  %v698 = vld [vmem:[%s3 + $0x64] sm:$0xf]
  %v699 = vld [vmem:[%s3 + $0x68] sm:$0xf]
  %v700 = vld [vmem:[%s3 + $0x6c] sm:$0xf]
  %v701 = vld [vmem:[%s3 + $0x70] sm:$0xf]
  %v702 = vld [vmem:[%s3 + $0x74] sm:$0xf]
  %v703 = vld [vmem:[%s3 + $0x78] sm:$0xf]
  %v704 = vld [vmem:[%s3 + $0x7c] sm:$0xf]
  %v705 = vld [vmem:[%s4] sm:$0x1]
  %v707 = vlaneseq
  %v708 = vshrl.u32 %v707, 7
  %v709 = vsub.s32 0, %v708
  %v710 = vrot.slane %v705, %v709
  %v744 = vunpack.c.l.b16 %v673
  %v745 = vunpack.c.l.b16 %v674
  %v746 = vunpack.c.l.b16 %v675
  %v747 = vunpack.c.l.b16 %v676
  %v748 = vunpack.c.l.b16 %v677
  %v749 = vunpack.c.l.b16 %v678
  %v750 = vunpack.c.l.b16 %v679
  %v751 = vunpack.c.l.b16 %v680
  %v752 = vunpack.c.l.b16 %v681
  %v753 = vunpack.c.l.b16 %v682
  %v754 = vunpack.c.l.b16 %v683
  %v755 = vunpack.c.l.b16 %v684
  %v756 = vunpack.c.l.b16 %v685
  %v757 = vunpack.c.l.b16 %v686
  %v758 = vunpack.c.l.b16 %v687
  %v759 = vunpack.c.l.b16 %v688
  %v760 = vunpack.c.l.b16 %v689
  %v761 = vunpack.c.l.b16 %v690
  %v762 = vunpack.c.l.b16 %v691
  %v763 = vunpack.c.l.b16 %v692
  %v764 = vunpack.c.l.b16 %v693
  %v765 = vunpack.c.l.b16 %v694
  %v766 = vunpack.c.l.b16 %v695
  %v767 = vunpack.c.l.b16 %v696
  %v768 = vunpack.c.l.b16 %v697
  %v769 = vunpack.c.l.b16 %v698
  %v770 = vunpack.c.l.b16 %v699
  %v771 = vunpack.c.l.b16 %v700
  %v772 = vunpack.c.l.b16 %v701
  %v773 = vunpack.c.l.b16 %v702
  %v774 = vunpack.c.l.b16 %v703
  %v775 = vunpack.c.l.b16 %v704
  %v776 = vpack.c.b16 %v745, %v744
  %v777 = vpack.c.b16 %v747, %v746
  %v778 = vpack.c.b16 %v749, %v748
  %v779 = vpack.c.b16 %v751, %v750
  %v780 = vpack.c.b16 %v753, %v752
  %v781 = vpack.c.b16 %v755, %v754
  %v782 = vpack.c.b16 %v757, %v756
  %v783 = vpack.c.b16 %v759, %v758
  %v784 = vpack.c.b16 %v761, %v760
  %v785 = vpack.c.b16 %v763, %v762
  %v786 = vpack.c.b16 %v765, %v764
  %v787 = vpack.c.b16 %v767, %v766
  %v788 = vpack.c.b16 %v769, %v768
  %v789 = vpack.c.b16 %v771, %v770
  %v790 = vpack.c.b16 %v773, %v772
  %v791 = vpack.c.b16 %v775, %v774
  %808 = vmatprep.subr.bf16.mxu0 0
  %809 = vmatpush1.bf16.msra.mxu0 %v776
  %810 = vmatprep.subr.bf16.mxu0 0
  %811 = vmatpush1.bf16.msra.mxu0 %v777
  %812 = vmatprep.subr.bf16.mxu0 0
  %813 = vmatpush1.bf16.msra.mxu0 %v778
  %814 = vmatprep.subr.bf16.mxu0 0
  %815 = vmatpush1.bf16.msra.mxu0 %v779
  %816 = vmatprep.subr.bf16.mxu0 0
  %817 = vmatpush1.bf16.msra.mxu0 %v780
  %818 = vmatprep.subr.bf16.mxu0 0
  %819 = vmatpush1.bf16.msra.mxu0 %v781
  %820 = vmatprep.subr.bf16.mxu0 0
  %821 = vmatpush1.bf16.msra.mxu0 %v782
  %822 = vmatprep.subr.bf16.mxu0 0
  %823 = vmatpush1.bf16.msra.mxu0 %v783
  %824 = vmatprep.subr.bf16.mxu0 0
  %825 = vmatpush1.bf16.msra.mxu0 %v784
  %826 = vmatprep.subr.bf16.mxu0 0
  %827 = vmatpush1.bf16.msra.mxu0 %v785
  %828 = vmatprep.subr.bf16.mxu0 0
  %829 = vmatpush1.bf16.msra.mxu0 %v786
  %830 = vmatprep.subr.bf16.mxu0 0
  %831 = vmatpush1.bf16.msra.mxu0 %v787
  %832 = vmatprep.subr.bf16.mxu0 0
  %833 = vmatpush1.bf16.msra.mxu0 %v788
  %834 = vmatprep.subr.bf16.mxu0 0
  %835 = vmatpush1.bf16.msra.mxu0 %v789
  %836 = vmatprep.subr.bf16.mxu0 0
  %837 = vmatpush1.bf16.msra.mxu0 %v790
  %838 = vmatprep.subr.bf16.mxu0 0
  %839 = vmatpush1.bf16.msra.mxu0 %v791
  %840 = vmatprep.mubr.bf16.mxu0 %v672
  %841 = vmatmul.mubr.bf16.gmra.mrb[0].mxu0 %v671
  %v842 = vpop.f32.mrb[0].mxu0
  %v843 = vadd.f32 %v710, %v842
  %v844 = vpop.f32.mrb[0].mxu0
  %v845 = vpop.f32.mrb[0].mxu0
  %v846 = vpop.f32.mrb[0].mxu0
  %847 = vdwg.mxu0
  %v848 = vmax.f32 %v843, 0.0
  %v849 = vpack.c.bf16 %v848, %v848
  %v850 = vld [vmem:[%s5] sm:$0xf]
  %v851 = vld [vmem:[%s5 + $0x4] sm:$0xf]
  %v852 = vld [vmem:[%s5 + $0x8] sm:$0xf]
  %v853 = vld [vmem:[%s5 + $0xc] sm:$0xf]
  %v854 = vld [vmem:[%s5 + $0x10] sm:$0xf]
  %v855 = vld [vmem:[%s5 + $0x14] sm:$0xf]
  %v856 = vld [vmem:[%s5 + $0x18] sm:$0xf]
  %v857 = vld [vmem:[%s5 + $0x1c] sm:$0xf]
  %v858 = vld [vmem:[%s5 + $0x20] sm:$0xf]
  %v859 = vld [vmem:[%s5 + $0x24] sm:$0xf]
  %v860 = vld [vmem:[%s5 + $0x28] sm:$0xf]
  %v861 = vld [vmem:[%s5 + $0x2c] sm:$0xf]
  %v862 = vld [vmem:[%s5 + $0x30] sm:$0xf]
  %v863 = vld [vmem:[%s5 + $0x34] sm:$0xf]
  %v864 = vld [vmem:[%s5 + $0x38] sm:$0xf]
  %v865 = vld [vmem:[%s5 + $0x3c] sm:$0xf]
  %v866 = vld [vmem:[%s6] sm:$0x1]
  %v868 = vlaneseq
  %v869 = vshrl.u32 %v868, 7
  %v870 = vsub.s32 0, %v869
  %v871 = vrot.slane %v866, %v870
  %v889 = vunpack.c.l.b16 %v850
  %v890 = vunpack.c.l.b16 %v851
  %v891 = vunpack.c.l.b16 %v852
  %v892 = vunpack.c.l.b16 %v853
  %v893 = vunpack.c.l.b16 %v854
  %v894 = vunpack.c.l.b16 %v855
  %v895 = vunpack.c.l.b16 %v856
  %v896 = vunpack.c.l.b16 %v857
  %v897 = vunpack.c.l.b16 %v858
  %v898 = vunpack.c.l.b16 %v859
  %v899 = vunpack.c.l.b16 %v860
  %v900 = vunpack.c.l.b16 %v861
  %v901 = vunpack.c.l.b16 %v862
  %v902 = vunpack.c.l.b16 %v863
  %v903 = vunpack.c.l.b16 %v864
  %v904 = vunpack.c.l.b16 %v865
  %v905 = vpack.c.b16 %v890, %v889
  %v906 = vpack.c.b16 %v892, %v891
  %v907 = vpack.c.b16 %v894, %v893
  %v908 = vpack.c.b16 %v896, %v895
  %v909 = vpack.c.b16 %v898, %v897
  %v910 = vpack.c.b16 %v900, %v899
  %v911 = vpack.c.b16 %v902, %v901
  %v912 = vpack.c.b16 %v904, %v903
  %921 = vmatprep.subr.bf16.mxu0 0
  %922 = vmatpush1.bf16.msra.mxu0 %v905
  %923 = vmatprep.subr.bf16.mxu0 0
  %924 = vmatpush1.bf16.msra.mxu0 %v906
  %925 = vmatprep.subr.bf16.mxu0 0
  %926 = vmatpush1.bf16.msra.mxu0 %v907
  %927 = vmatprep.subr.bf16.mxu0 0
  %928 = vmatpush1.bf16.msra.mxu0 %v908
  %929 = vmatprep.subr.bf16.mxu0 0
  %930 = vmatpush1.bf16.msra.mxu0 %v909
  %931 = vmatprep.subr.bf16.mxu0 0
  %932 = vmatpush1.bf16.msra.mxu0 %v910
  %933 = vmatprep.subr.bf16.mxu0 0
  %934 = vmatpush1.bf16.msra.mxu0 %v911
  %935 = vmatprep.subr.bf16.mxu0 0
  %936 = vmatpush1.bf16.msra.mxu0 %v912
  %937 = vmatprep.subr.bf16.mxu0 0
  %938 = vmatpush1.bf16.msra.mxu0 0
  %939 = vmatprep.subr.bf16.mxu0 0
  %940 = vmatpush1.bf16.msra.mxu0 0
  %941 = vmatprep.subr.bf16.mxu0 0
  %942 = vmatpush1.bf16.msra.mxu0 0
  %943 = vmatprep.subr.bf16.mxu0 0
  %944 = vmatpush1.bf16.msra.mxu0 0
  %945 = vmatprep.subr.bf16.mxu0 0
  %946 = vmatpush1.bf16.msra.mxu0 0
  %947 = vmatprep.subr.bf16.mxu0 0
  %948 = vmatpush1.bf16.msra.mxu0 0
  %949 = vmatprep.subr.bf16.mxu0 0
  %950 = vmatpush1.bf16.msra.mxu0 0
  %951 = vmatprep.subr.bf16.mxu0 0
  %952 = vmatpush1.bf16.msra.mxu0 0
  %953 = vmatprep.mubr.bf16.mxu0 0
  %954 = vmatmul.mubr.bf16.gmra.mrb[0].mxu0 %v849
  %v955 = vpop.f32.mrb[0].mxu0
  %v956 = vadd.f32 %v871, %v955
  %v957 = vpop.f32.mrb[0].mxu0
  %v958 = vpop.f32.mrb[0].mxu0
  %v959 = vpop.f32.mrb[0].mxu0
  %960 = vdwg.mxu0
  %v961 = vmax.f32 %v956, 0.0
  %v962 = vpack.c.bf16 %v961, %v961
  %v963 = vld [vmem:[%s7] sm:$0xf]
  %v964 = vld [vmem:[%s7 + $0x4] sm:$0xf]
  %v965 = vld [vmem:[%s7 + $0x8] sm:$0xf]
  %v966 = vld [vmem:[%s7 + $0xc] sm:$0xf]
  %v967 = vld [vmem:[%s8] sm:$0x1]
  %v969 = vlaneseq
  %v970 = vshrl.u32 %v969, 7
  %v971 = vsub.s32 0, %v970
  %v972 = vrot.slane %v967, %v971
  %v978 = vunpack.c.l.b16 %v963
  %v979 = vunpack.c.l.b16 %v964
  %v980 = vunpack.c.l.b16 %v965
  %v981 = vunpack.c.l.b16 %v966
  %v982 = vpack.c.b16 %v979, %v978
  %v983 = vpack.c.b16 %v981, %v980
  %vm986 = vcmask 261120
  %v988 = vsel %vm986, %v962, 0
  %990 = vmatprep.subr.bf16.mxu0 0
  %991 = vmatpush1.bf16.msra.mxu0 %v982
  %992 = vmatprep.subr.bf16.mxu0 0
  %993 = vmatpush1.bf16.msra.mxu0 %v983
  %994 = vmatprep.subr.bf16.mxu0 0
  %995 = vmatpush1.bf16.msra.mxu0 0
  %996 = vmatprep.subr.bf16.mxu0 0
  %997 = vmatpush1.bf16.msra.mxu0 0
  %998 = vmatprep.subr.bf16.mxu0 0
  %999 = vmatpush1.bf16.msra.mxu0 0
  %1000 = vmatprep.subr.bf16.mxu0 0
  %1001 = vmatpush1.bf16.msra.mxu0 0
  %1002 = vmatprep.subr.bf16.mxu0 0
  %1003 = vmatpush1.bf16.msra.mxu0 0
  %1004 = vmatprep.subr.bf16.mxu0 0
  %1005 = vmatpush1.bf16.msra.mxu0 0
  %1006 = vmatprep.subr.bf16.mxu0 0
  %1007 = vmatpush1.bf16.msra.mxu0 0
  %1008 = vmatprep.subr.bf16.mxu0 0
  %1009 = vmatpush1.bf16.msra.mxu0 0
  %1010 = vmatprep.subr.bf16.mxu0 0
  %1011 = vmatpush1.bf16.msra.mxu0 0
  %1012 = vmatprep.subr.bf16.mxu0 0
  %1013 = vmatpush1.bf16.msra.mxu0 0
  %1014 = vmatprep.subr.bf16.mxu0 0
  %1015 = vmatpush1.bf16.msra.mxu0 0
  %1016 = vmatprep.subr.bf16.mxu0 0
  %1017 = vmatpush1.bf16.msra.mxu0 0
  %1018 = vmatprep.subr.bf16.mxu0 0
  %1019 = vmatpush1.bf16.msra.mxu0 0
  %1020 = vmatprep.subr.bf16.mxu0 0
  %1021 = vmatpush1.bf16.msra.mxu0 0
  %1022 = vmatprep.mubr.bf16.mxu0 0
  %1023 = vmatmul.mubr.bf16.gmra.mrb[0].mxu0 %v988
  %v1024 = vpop.f32.mrb[0].mxu0
  %v1025 = vadd.f32 %v972, %v1024
  %v1026 = vpop.f32.mrb[0].mxu0
  %v1027 = vpop.f32.mrb[0].mxu0
  %v1028 = vpop.f32.mrb[0].mxu0
  %1029 = vdwg.mxu0
  %vm1030 = vcmask 64512
  %1031 = vst.msk [vmem:[%s9] sm:$0xff] %vm1030, %v1025
  // Predicated region
  $region38: #{netmlp_forward.1} parent=0 // pred_check
    _
  $region39: #{netmlp_forward.1} parent=0 // pred_check_branch
    %1033 = sbr.rel (0) target = $region41
  $region40: #{netmlp_forward.1} parent=0 // pred_region
    _
  $region41: #{netmlp_forward.1} parent=0 // pred_fallthru
    _
  // Predicated region
  $region42: #{netmlp_forward.1} parent=0 // pred_check
    _
  $region43: #{netmlp_forward.1} parent=0 // pred_check_branch
    %1035 = sbr.rel (0) target = $region45
  $region44: #{netmlp_forward.1} parent=0 // pred_region
    _
  $region45: #{netmlp_forward.1} parent=0 // pred_fallthru
    _

</llo_original>
